<compile_context>
chip_gen: v5e
topology: v5e:2x2
jax: 0.10.0
libtpu: 0.0.40
codegen_flags: <defaults>
</compile_context>

<pallas_src>
import math

import jax
import jax.numpy as jnp
from jax.experimental import pallas as pl
from jax.experimental.pallas import tpu as pltpu


def _round_up(x, m):
    return (x + m - 1) // m * m


def _cdiv(a, b):
    return -(-a // b)


# --------------------------------------------------------------------------------------
# One-time parameter preparation (hoisted out of the train step).
# --------------------------------------------------------------------------------------
def prepare_params(params, *, block_t=None, block_k=None, num_chunks=2):
    """Per-parameter-load prep:
      - fuse wmu|wls into one [ND, 2L] bf16 weight (padded to the encoder K tile),
      - pad/cast the decoder weight to bf16 [L, T_pad],
      - pad the decoder-bias tail with -1e4 so padded triu lanes yield exactly-zero BCE,
      - pick streamed tile sizes (~2 MiB per decoder grid step by default).
    """
    ND, L = params["wmu"].shape
    T = params["wd"].shape[1]

    # Decoder stream tiling: lane-dense, sized so each grid step moves >= ~2 MiB.
    if block_t is None:
        bytes_per_col = 2 * L + 2 * 8 + 4          # wd (bf16) + tgt (bf16, nominal B~8) + bd (f32)
        block_t = max(1024, min(8192, _round_up((2 << 20) // bytes_per_col, 128)))
    tile_t = _round_up(min(block_t, _round_up(T, 128)), 128)
    n_t = _cdiv(T, tile_t)
    n_chunks = max(1, min(num_chunks, n_t))        # outer "parallel" axis (v7x: 2 TCs)
    tiles_per_chunk = _cdiv(n_t, n_chunks)
    T_pad = n_chunks * tiles_per_chunk * tile_t

    # Encoder K tiling (streams the fused encoder weight; v7x-safe at large ND).
    if block_k is None:
        block_k = 2048
    tile_k = _round_up(min(block_k, _round_up(ND, 128)), 128)
    ND_pad = _round_up(ND, tile_k)

    w_enc = jnp.concatenate([params["wmu"], params["wls"]], axis=1)
    w_enc = jnp.pad(w_enc, ((0, ND_pad - ND), (0, 0))).astype(jnp.bfloat16)
    b_enc = jnp.concatenate([params["bmu"], params["bls"]]).reshape(1, 2 * L).astype(jnp.float32)

    wd = jnp.pad(params["wd"], ((0, 0), (0, T_pad - T))).astype(jnp.bfloat16)
    bd = jnp.pad(params["bd"].astype(jnp.float32), (0, T_pad - T),
                 constant_values=-1.0e4).reshape(1, T_pad)

    cfg = dict(L=L, ND=ND, ND_pad=ND_pad, tile_k=tile_k,
               T=T, T_pad=T_pad, tile_t=tile_t,
               n_chunks=n_chunks, tiles_per_chunk=tiles_per_chunk)
    return dict(w_enc=w_enc, b_enc=b_enc, wd=wd, bd=bd, cfg=cfg)


# --------------------------------------------------------------------------------------
# Encoder kernel: fused mu|logstd projection + reparameterize + KL.
# --------------------------------------------------------------------------------------
def _encode(h, w_enc, b_enc, eps, *, L, tile_k, inv_sqrt_n):
    """Returns (z [B, L] bf16, kl [1, 1] f32)."""
    B, ND_pad = h.shape
    n_k = ND_pad // tile_k

    def kernel(h_ref, we_ref, be_ref, eps_ref, z_ref, kl_ref, acc_ref):
        k = pl.program_id(0)

        @pl.when(k == 0)
        def _():
            acc_ref[...] = jnp.zeros_like(acc_ref)

        acc_ref[...] += jnp.dot(h_ref[...], we_ref[...],
                                preferred_element_type=jnp.float32)

        @pl.when(k == pl.num_programs(0) - 1)
        def _():
            # 1/sqrt(N) input scale folded into the matmul output (same math,
            # no extra HBM pass over h in the wrapper).
            enc = acc_ref[...] * inv_sqrt_n + be_ref[...]
            mu = enc[:, :L]
            logstd = enc[:, L:]
            std = jnp.exp(0.5 * logstd)
            z_ref[...] = (mu + eps_ref[...] * std).astype(jnp.bfloat16)
            # std*std == exp(logstd): one transcendental saved.
            kl_ref[0, 0] = (-0.5 * jnp.sum(1.0 + logstd - mu * mu - std * std)
                            / float(B))

    vmem_bytes = int(2 * (B * tile_k * 2 + tile_k * 2 * L * 2)   # streamed h / w_enc tiles
                     + B * 2 * L * 4                              # f32 accumulator
                     + B * L * (4 + 2) + 2 * L * 4) + (4 << 20)

    return pl.pallas_call(
        kernel,
        out_shape=(jax.ShapeDtypeStruct((B, L), jnp.bfloat16),
                   jax.ShapeDtypeStruct((1, 1), jnp.float32)),
        grid_spec=pltpu.PrefetchScalarGridSpec(
            num_scalar_prefetch=0,
            grid=(n_k,),
            in_specs=[
                pl.BlockSpec((B, tile_k), lambda k: (0, k)),        # h (streamed over K)
                pl.BlockSpec((tile_k, 2 * L), lambda k: (k, 0)),    # fused encoder weight
                pl.BlockSpec((1, 2 * L), lambda k: (0, 0)),         # fused encoder bias
                pl.BlockSpec((B, L), lambda k: (0, 0)),             # eps
            ],
            out_specs=[
                pl.BlockSpec((B, L), lambda k: (0, 0)),             # z (bf16)
                pl.BlockSpec((1, 1), lambda k: (0, 0),
                             memory_space=pltpu.MemorySpace.SMEM),  # KL scalar
            ],
            scratch_shapes=[pltpu.VMEM((B, 2 * L), jnp.float32)],
        ),
        compiler_params=pltpu.CompilerParams(
            dimension_semantics=("arbitrary",),
            vmem_limit_bytes=vmem_bytes,
        ),
    )(h, w_enc, b_enc, eps)


# --------------------------------------------------------------------------------------
# Decoder + BCE kernel: streams the decoder weight / triu target; emits per-chunk
# lane-dense BCE partial sums.
# --------------------------------------------------------------------------------------
def _decode_bce(z, wd, bd, tgt, *, tile_t, n_chunks, tiles_per_chunk, stream_buffers=None):
    B, L = z.shape
    n_lane_groups = tile_t // 128

    def kernel(z_ref, wd_ref, bd_ref, tgt_ref, part_ref, acc_ref):
        t = pl.program_id(1)

        @pl.when(t == 0)
        def _():
            acc_ref[...] = jnp.zeros_like(acc_ref)

        # Decoder logits for this tile's triu columns (bf16 MXU, f32 accumulate).
        logits = (jnp.dot(z_ref[...], wd_ref[...],
                          preferred_element_type=jnp.float32) + bd_ref[...])

        # BCE straight from logits (stable softplus form); min(., 100) reproduces
        # torch BCELoss's log clamp at -100.  Padded lanes: wd cols are 0 and the bias
        # tail is -1e4 so sp_pos == 0 and tvals == 0 -> exactly-zero BCE (no mask).
        tvals = tgt_ref[...].astype(jnp.float32)
        sp_pos = jnp.maximum(logits, 0.0) + jnp.log1p(jnp.exp(-jnp.abs(logits)))
        sp_neg = sp_pos - logits
        bce = (tvals * jnp.minimum(sp_neg, 100.0)
               + (1.0 - tvals) * jnp.minimum(sp_pos, 100.0))

        # Fold lane groups into the (B, 128) accumulator with pure VPU adds; the
        # cross-lane reduce happens once, outside the kernel.
        part = bce[:, 0:128]
        for g in range(1, n_lane_groups):
            part = part + bce[:, g * 128:(g + 1) * 128]
        acc_ref[...] += part

        @pl.when(t == pl.num_programs(1) - 1)
        def _():
            part_ref[0] = acc_ref[...]

    def stream_spec(shape):
        idx = lambda c, t: (0, c * tiles_per_chunk + t)
        if stream_buffers is None:
            return pl.BlockSpec(shape, idx)
        # v5e knob: deepen buffering if DMA issue latency is still exposed at small L.
        return pl.BlockSpec(shape, idx, pipeline_mode=pl.Buffered(stream_buffers))

    nbuf = 2 if stream_buffers is None else stream_buffers
    stream_bytes = tile_t * (L * 2 + 4 + B * 2)        # wd + bd + tgt, one buffer set
    temp_bytes = 8 * B * tile_t * 4                    # logits / softplus / bce f32 temporaries
    vmem_bytes = int(nbuf * stream_bytes + 2 * B * L * 2 + temp_bytes
                     + 3 * B * 128 * 4) + (8 << 20)
    vmem_bytes = min(vmem_bytes, 56 << 20)             # headroom below v7x's 64 MiB

    return pl.pallas_call(
        kernel,
        out_shape=jax.ShapeDtypeStruct((n_chunks, B, 128), jnp.float32),
        grid_spec=pltpu.PrefetchScalarGridSpec(
            num_scalar_prefetch=0,
            grid=(n_chunks, tiles_per_chunk),
            in_specs=[
                pl.BlockSpec((B, L), lambda c, t: (0, 0)),          # z (tiny, resident)
                stream_spec((L, tile_t)),                           # decoder weight (streamed)
                stream_spec((1, tile_t)),                           # decoder bias (streamed)
                stream_spec((B, tile_t)),                           # triu target bf16 (streamed)
            ],
            out_specs=pl.BlockSpec((1, B, 128), lambda c, t: (c, 0, 0)),
            scratch_shapes=[pltpu.VMEM((B, 128), jnp.float32)],
        ),
        compiler_params=pltpu.CompilerParams(
            # Outer chunk axis is "parallel" so v7x's two TensorCores stream independent
            # halves; on single-core v5e/v6e it simply runs sequentially.
            dimension_semantics=("parallel", "arbitrary"),
            vmem_limit_bytes=vmem_bytes,
        ),
    )(z, wd, bd, tgt)


# --------------------------------------------------------------------------------------
# Forward (training mode): loss_recon + loss_kl, matching GraphVAE.forward.
# --------------------------------------------------------------------------------------
def graph_vae_forward(prepped, node_features, adj_truth, eps, *, stream_buffers=None):
    cfg = prepped["cfg"]
    L, ND, ND_pad, tile_k = cfg["L"], cfg["ND"], cfg["ND_pad"], cfg["tile_k"]
    T, T_pad, tile_t = cfg["T"], cfg["T_pad"], cfg["tile_t"]
    n_chunks, tiles_per_chunk = cfg["n_chunks"], cfg["tiles_per_chunk"]

    B, N, D = node_features.shape
    assert N * D == ND, "node_features inconsistent with prepared params"
    inv_sqrt_n = 1.0 / math.sqrt(N)

    h = node_features.reshape(B, ND).astype(jnp.bfloat16)
    if ND_pad != ND:
        h = jnp.pad(h, ((0, 0), (0, ND_pad - ND)))

    # Row-major upper-triangular gather == adj_truth[triu_mask].view(B, -1); streamed
    # to the kernel as bf16 (0/1 values are exact) to halve its HBM bytes.
    # TODO(synk): for large N, precompute this gather at data-load time (or stream dense
    # adjacency rows with an in-kernel triu mask) -- it is an extra un-pipelined HBM pass.
    ti, tj = jnp.triu_indices(N)
    tgt = adj_truth[:, ti, tj].astype(jnp.bfloat16)
    if T_pad != T:
        tgt = jnp.pad(tgt, ((0, 0), (0, T_pad - T)))

    z, kl = _encode(h, prepped["w_enc"], prepped["b_enc"], eps.astype(jnp.float32),
                    L=L, tile_k=tile_k, inv_sqrt_n=inv_sqrt_n)
    partials = _decode_bce(z, prepped["wd"], prepped["bd"], tgt,
                           tile_t=tile_t, n_chunks=n_chunks,
                           tiles_per_chunk=tiles_per_chunk,
                           stream_buffers=stream_buffers)
    loss_recon = jnp.sum(partials) / float(B * T)
    return loss_recon + kl[0, 0]


# --------------------------------------------------------------------------------------
# Parameter init mirroring MLP_VAE.__init__ (weights stored [in, out]).
# --------------------------------------------------------------------------------------
def init_params(key, input_dim, latent_dim, max_num_nodes):
    """xavier_uniform (gain=sqrt(2)) weights; torch-default U(-1/sqrt(fan_in), .) biases."""
    in_sz = input_dim * max_num_nodes
    out_sz = max_num_nodes * (max_num_nodes + 1) // 2
    gain = math.sqrt(2.0)

    def xavier(k, fan_in, fan_out):
        bound = gain * math.sqrt(6.0 / (fan_in + fan_out))
        return jax.random.uniform(k, (fan_in, fan_out), jnp.float32, -bound, bound)

    def bias(k, fan_in, fan_out):
        bound = 1.0 / math.sqrt(fan_in)
        return jax.random.uniform(k, (fan_out,), jnp.float32, -bound, bound)

    ks = jax.random.split(key, 6)
    return {
        "wmu": xavier(ks[0], in_sz, latent_dim),
        "bmu": bias(ks[1], in_sz, latent_dim),
        "wls": xavier(ks[2], in_sz, latent_dim),
        "bls": bias(ks[3], in_sz, latent_dim),
        "wd":  xavier(ks[4], latent_dim, out_sz),
        "bd":  bias(ks[5], latent_dim, out_sz),
    }


def _reference_loss(node_features, adj_truth, params, eps):
    """Pure-JAX reference mirroring the PyTorch forward (same bf16 operand casts)."""
    B, N, D = node_features.shape
    inv_sqrt_n = 1.0 / math.sqrt(N)
    h = node_features.reshape(B, N * D).astype(jnp.bfloat16)
    mu = (jnp.dot(h, params["wmu"].astype(jnp.bfloat16),
                  preferred_element_type=jnp.float32) * inv_sqrt_n + params["bmu"])
    logstd = (jnp.dot(h, params["wls"].astype(jnp.bfloat16),
                      preferred_element_type=jnp.float32) * inv_sqrt_n + params["bls"])
    std = jnp.exp(0.5 * logstd)
    z = (mu + eps * std).astype(jnp.bfloat16)
    logits = (jnp.dot(z, params["wd"].astype(jnp.bfloat16),
                      preferred_element_type=jnp.float32) + params["bd"])
    prob = jax.nn.sigmoid(logits)
    ti, tj = jnp.triu_indices(N)
    tgt = adj_truth[:, ti, tj]
    logp = jnp.maximum(jnp.log(prob), -100.0)
    log1mp = jnp.maximum(jnp.log1p(-prob), -100.0)
    loss_recon = -jnp.mean(tgt * logp + (1.0 - tgt) * log1mp)
    loss_kl = -0.5 * jnp.sum(1.0 + logstd - mu * mu - jnp.exp(logstd)) / B
    return loss_recon + loss_kl


if __name__ == "__main__":
    # Small, forward-consistent shapes: batch=2, max_num_nodes=32, input_dim=8, latent=32.
    B, N, D, L = 2, 32, 8, 32

    key = jax.random.PRNGKey(0)
    k_x, k_a, k_p, k_eps = jax.random.split(key, 4)

    node_features = jax.random.normal(k_x, (B, N, D), dtype=jnp.float32)
    a = (jax.random.uniform(k_a, (B, N, N)) > 0.5).astype(jnp.float32)
    adj_truth = jnp.maximum(a, jnp.transpose(a, (0, 2, 1)))            # symmetric 0/1

    params = init_params(k_p, D, L, N)
    eps = jax.random.normal(k_eps, (B, L), dtype=jnp.float32)          # reparam noise

    # Small block_t / block_k so the streamed, chunked and K-accumulated paths are all
    # exercised at toy shapes; defaults (auto ~2 MiB tiles) are for realistic N.
    prepped = prepare_params(params, block_t=128, block_k=128, num_chunks=2)

    loss = graph_vae_forward(prepped, node_features, adj_truth, eps)
    jax.block_until_ready(loss)

    ref = _reference_loss(node_features, adj_truth, params, eps)
    assert loss.shape == () and bool(jnp.isfinite(loss))
    assert jnp.allclose(loss, ref, rtol=5e-2, atol=5e-2), (float(loss), float(ref))
    print("KERNEL_OK")
</pallas_src>

<mosaic_0001>
module attributes {stable_mosaic.version = 11 : i64} {
  func.func @kernel(%arg0: i32, %arg1: memref<2x128xbf16, #tpu.memory_space<vmem>>, %arg2: memref<128x64xbf16, #tpu.memory_space<vmem>>, %arg3: memref<1x64xf32, #tpu.memory_space<vmem>>, %arg4: memref<2x32xf32, #tpu.memory_space<vmem>>, %arg5: memref<2x32xbf16, #tpu.memory_space<vmem>>, %arg6: memref<1x1xf32, #tpu.memory_space<smem>>, %arg7: memref<2x64xf32, #tpu.memory_space<vmem>>) attributes {dimension_semantics = [#tpu.dimension_semantics<arbitrary>], iteration_bounds = array<i64: 2>, scalar_prefetch = 0 : i64, scratch_operands = 1 : i64, tpu.core_type = #tpu.core_type<tc>, window_params = [{transform_indices = @transform_0, window_bounds = array<i64: 2, 128>}, {transform_indices = @transform_1, window_bounds = array<i64: 128, 64>}, {pipeline_mode = #tpu.pipeline_mode<synchronous>, transform_indices = @transform_2, window_bounds = array<i64: 1, 64>}, {pipeline_mode = #tpu.pipeline_mode<synchronous>, transform_indices = @transform_3, window_bounds = array<i64: 2, 32>}, {pipeline_mode = #tpu.pipeline_mode<synchronous>, transform_indices = @transform_4, window_bounds = array<i64: 2, 32>}, {transform_indices = @transform_5, window_bounds = array<i64: 1, 1>}]} {
    %c0_i32 = arith.constant 0 : i32
    %0 = arith.cmpi eq, %arg0, %c0_i32 : i32
    %1 = arith.extui %0 : i1 to i32
    %c0_i32_0 = arith.constant 0 : i32
    %2 = arith.cmpi ne, %1, %c0_i32_0 : i32
    scf.if %2 {
      %cst_9 = arith.constant 0.000000e+00 : f32
      %12 = vector.broadcast %cst_9 : f32 to vector<2x64xf32>
      %c0_10 = arith.constant 0 : index
      %c0_11 = arith.constant 0 : index
      %13 = vector.load %arg7[%c0_10, %c0_11] : memref<2x64xf32, #tpu.memory_space<vmem>>, vector<2x64xf32>
      tpu.vector_store %arg7[%c0_10, %c0_11], %12 {strides = array<i32>} : memref<2x64xf32, #tpu.memory_space<vmem>>, vector<2x64xf32>,
    } else {
    }
    %c0 = arith.constant 0 : index
    %c0_1 = arith.constant 0 : index
    %3 = vector.load %arg7[%c0, %c0_1] : memref<2x64xf32, #tpu.memory_space<vmem>>, vector<2x64xf32>
    %c0_2 = arith.constant 0 : index
    %c0_3 = arith.constant 0 : index
    %4 = vector.load %arg1[%c0_2, %c0_3] : memref<2x128xbf16, #tpu.memory_space<vmem>>, vector<2x128xbf16>
    %c0_4 = arith.constant 0 : index
    %c0_5 = arith.constant 0 : index
    %5 = vector.load %arg2[%c0_4, %c0_5] : memref<128x64xbf16, #tpu.memory_space<vmem>>, vector<128x64xbf16>
    %cst = arith.constant dense<0.000000e+00> : vector<2x64xf32>
    %6 = tpu.matmul %4, %5, %cst {dimension_numbers = #tpu.dot_dimension_numbers<[1], [0], [0], [1], [0, 0, 1, 1], [], []>} : vector<2x128xbf16>, vector<128x64xbf16>, vector<2x64xf32> -> vector<2x64xf32>
    %7 = arith.addf %3, %6 : vector<2x64xf32>
    %c0_6 = arith.constant 0 : index
    %c0_7 = arith.constant 0 : index
    %8 = vector.load %arg7[%c0_6, %c0_7] : memref<2x64xf32, #tpu.memory_space<vmem>>, vector<2x64xf32>
    tpu.vector_store %arg7[%c0_6, %c0_7], %7 {strides = array<i32>} : memref<2x64xf32, #tpu.memory_space<vmem>>, vector<2x64xf32>,
    %c1_i32 = arith.constant 1 : i32
    %9 = arith.cmpi eq, %arg0, %c1_i32 : i32
    %10 = arith.extui %9 : i1 to i32
    %c0_i32_8 = arith.constant 0 : i32
    %11 = arith.cmpi ne, %10, %c0_i32_8 : i32
    scf.if %11 {
      %c0_9 = arith.constant 0 : index
      %c0_10 = arith.constant 0 : index
      %12 = vector.load %arg7[%c0_9, %c0_10] : memref<2x64xf32, #tpu.memory_space<vmem>>, vector<2x64xf32>
      %cst_11 = arith.constant 0.176776692 : f32
      %13 = vector.broadcast %cst_11 : f32 to vector<2x64xf32>
      %14 = arith.mulf %12, %13 : vector<2x64xf32>
      %c0_12 = arith.constant 0 : index
      %c0_13 = arith.constant 0 : index
      %15 = vector.load %arg3[%c0_12, %c0_13] : memref<1x64xf32, #tpu.memory_space<vmem>>, vector<1x64xf32>
      %16 = vector.broadcast %15 : vector<1x64xf32> to vector<2x64xf32>
      %17 = arith.addf %14, %16 : vector<2x64xf32>
      %18 = vector.extract_strided_slice %17 {offsets = [0, 0], sizes = [2, 32], strides = [1, 1]} : vector<2x64xf32> to vector<2x32xf32>
      %19 = vector.extract_strided_slice %17 {offsets = [0, 32], sizes = [2, 32], strides = [1, 1]} : vector<2x64xf32> to vector<2x32xf32>
      %cst_14 = arith.constant 5.000000e-01 : f32
      %20 = vector.broadcast %cst_14 : f32 to vector<2x32xf32>
      %21 = arith.mulf %20, %19 : vector<2x32xf32>
      %22 = math.exp %21 : vector<2x32xf32>
      %c0_15 = arith.constant 0 : index
      %c0_16 = arith.constant 0 : index
      %23 = vector.load %arg4[%c0_15, %c0_16] : memref<2x32xf32, #tpu.memory_space<vmem>>, vector<2x32xf32>
      %24 = arith.mulf %23, %22 : vector<2x32xf32>
      %25 = arith.addf %18, %24 : vector<2x32xf32>
      %26 = arith.truncf %25 : vector<2x32xf32> to vector<2x32xbf16>
      %c0_17 = arith.constant 0 : index
      %c0_18 = arith.constant 0 : index
      %27 = vector.load %arg5[%c0_17, %c0_18] : memref<2x32xbf16, #tpu.memory_space<vmem>>, vector<2x32xbf16>
      tpu.vector_store %arg5[%c0_17, %c0_18], %26 {strides = array<i32>} : memref<2x32xbf16, #tpu.memory_space<vmem>>, vector<2x32xbf16>,
      %cst_19 = arith.constant 1.000000e+00 : f32
      %28 = vector.broadcast %cst_19 : f32 to vector<2x32xf32>
      %29 = arith.addf %28, %19 : vector<2x32xf32>
      %30 = arith.mulf %18, %18 : vector<2x32xf32>
      %31 = arith.subf %29, %30 : vector<2x32xf32>
      %32 = arith.mulf %22, %22 : vector<2x32xf32>
      %33 = arith.subf %31, %32 : vector<2x32xf32>
      %34 = vector.shape_cast %33 : vector<2x32xf32> to vector<1x2x32xf32>
      %cst_20 = arith.constant dense<0.000000e+00> : vector<1xf32>
      %35 = vector.multi_reduction <add>, %34, %cst_20 [1, 2] : vector<1x2x32xf32> to vector<1xf32>
      %36 = vector.shape_cast %35 : vector<1xf32> to vector<1x1x1xf32>
      %37 = vector.extract %36[0, 0, 0] : f32 from vector<1x1x1xf32>
      %cst_21 = arith.constant -5.000000e-01 : f32
      %38 = arith.mulf %cst_21, %37 : f32
      %cst_22 = arith.constant 2.000000e+00 : f32
      %39 = arith.divf %38, %cst_22 : f32
      %c0_23 = arith.constant 0 : index
      %c0_24 = arith.constant 0 : index
      %40 = memref.load %arg6[%c0_23, %c0_24] : memref<1x1xf32, #tpu.memory_space<smem>>
      memref.store %39, %arg6[%c0_23, %c0_24] : memref<1x1xf32, #tpu.memory_space<smem>>
    } else {
    }
    return
  }
  func.func @transform_0(%arg0: i32) -> (i32, i32) {
    %c0_i32 = arith.constant 0 : i32
    %c0_i32_0 = arith.constant 0 : i32
    return %c0_i32, %arg0 : i32, i32
  }
  func.func @transform_1(%arg0: i32) -> (i32, i32) {
    %c0_i32 = arith.constant 0 : i32
    %c0_i32_0 = arith.constant 0 : i32
    return %arg0, %c0_i32 : i32, i32
  }
  func.func @transform_2(%arg0: i32) -> (i32, i32) {
    %c0_i32 = arith.constant 0 : i32
    %c0_i32_0 = arith.constant 0 : i32
    %c0_i32_1 = arith.constant 0 : i32
    return %c0_i32, %c0_i32_0 : i32, i32
  }
  func.func @transform_3(%arg0: i32) -> (i32, i32) {
    %c0_i32 = arith.constant 0 : i32
    %c0_i32_0 = arith.constant 0 : i32
    %c0_i32_1 = arith.constant 0 : i32
    return %c0_i32, %c0_i32_0 : i32, i32
  }
  func.func @transform_4(%arg0: i32) -> (i32, i32) {
    %c0_i32 = arith.constant 0 : i32
    %c0_i32_0 = arith.constant 0 : i32
    %c0_i32_1 = arith.constant 0 : i32
    return %c0_i32, %c0_i32_0 : i32, i32
  }
  func.func @transform_5(%arg0: i32) -> (i32, i32) {
    %c0_i32 = arith.constant 0 : i32
    %c0_i32_0 = arith.constant 0 : i32
    %c0_i32_1 = arith.constant 0 : i32
    return %c0_i32, %c0_i32_0 : i32, i32
  }
}

</mosaic_0001>

<llo_original>
// kernel: tpu_custom_call.1
$region0: #{tpu_custom_call.1}
  #allocation0 [shape = 'u32[]', space=smem, size = 0x4, offset = 0x4, fixed_abs, tag = 'smem constant byte address 0x4 - core index']
  #allocation1 [shape = 'u32[72,128]{1,0:T(1,128)}', space=vmem, size = 0x9000, scoped, tag = 'internal scratch']
  #allocation2 [shape = 'f32[2,64]{1,0:T(2,128)}', space=vmem, size = 0x400, scoped, tag = 'scratch operand']
  %s0 = inlined_call_operand.vmem [shape: bf16[2,256], index: 0, kind: input, shape index: {}]
  %s1 = inlined_call_operand.vmem [shape: bf16[256,64], index: 1, kind: input, shape index: {}]
  %s2 = inlined_call_operand.vmem [shape: f32[1,64], index: 2, kind: input, shape index: {}]
  %s3 = inlined_call_operand.vmem [shape: f32[2,32], index: 3, kind: input, shape index: {}]
  %s4 = inlined_call_operand.hbm [shape: bf16[2,32], index: 4, kind: output, shape index: {0}]
  %s5 = inlined_call_operand.hbm [shape: f32[1,1], index: 5, kind: output, shape index: {1}]
  %6 = xla_tuple %s4, %s5
  %s7 = sld [smem:[#allocation0]]
  $region65: #{tpu_custom_call.1} parent=0
    _
  %s9 = ssub.s32 1, %s7
  %s10 = scalar_select 0, %s9, %s7
  $region1: #{tpu_custom_call.1} parent=0
    #allocation3 [shape = 'u8[512]{0}', space=vmem, size = 0x400, scoped, tag = 'output window, operand 0, single buffered']
    #allocation4 [shape = 's32[2]{0}', space=sflag, size = 0x8, scoped, tag = 'scoped memory for tpu_custom_call.1']
    #allocation5 [shape = 's32[2]{0}', space=sflag, size = 0x8, scoped, tag = 'scoped memory for tpu_custom_call.1']
    #allocation6 [shape = 'u8[512]{0}', space=smem, size = 0x200, scoped, tag = 'output window, operand 1, single buffered']
    %11 = vsyncpa [#allocation4], 0
    %12 = vsyncpa [#allocation5], 0
    loop: start=0, step=1, limit=4
    $region2: #{tpu_custom_call.1} parent=1 // loop_pre_header
      _
    $region3: #{tpu_custom_call.1} parent=1 // loop_header
      %s14 = sphi 0, %s18
      %p15 = scmp.ge.s32.totalorder %s14, 4
      %s24 = sphi 0, %s26
      %s27 = sphi 0, %s24
      %s28 = sphi 0, %s27
      %s44 = sphi 0, %s28
      %s50 = sphi 0, %s52
      %s53 = sphi 0, %s50
      %s54 = sphi 0, %s53
      %s70 = sphi 0, %s54
      %s74 = sphi 0, %s74
      %s76 = sphi 0, %s74
      %s77 = sphi 0, %s76
      %s91 = sphi 0, %s77
      %s95 = sphi 0, %s95
      %s97 = sphi 0, %s95
      %s98 = sphi 0, %s97
      %s112 = sphi 0, %s98
      %s116 = sphi 0, %s116
      %s118 = sphi 0, %s116
      %s119 = sphi 0, %s118
      %s133 = sphi 0, %s119
      %s137 = sphi 0, %s137
      %s139 = sphi 0, %s137
      %s140 = sphi 0, %s139
      %s154 = sphi 0, %s140
    $region4: #{tpu_custom_call.1} parent=1 // loop_header_branch
      %17 = sbr.rel (%p15) target = $region8
    $region5: #{tpu_custom_call.1} parent=1 // loop_body
      %s19 = ssub.s32 %s14, 1
      %s20 = ssub.s32 %s14, 2
      %s21 = sadd.s32 %s14, 1
      %s22 = ssub.s32 %s14, %s21
      %p23 = scmp.eq.s32.totalorder %s22, 0
      %s25 = sadd.s32 %s24, 1
      %s26 = scalar_select %p23, %s24, %s25
      %p29 = pneg %p23
      %p30 = scmp.eq.s32.totalorder %s14, 1
      %p31 = por %p29, %p30
      %p32 = scmp.ne.s32.totalorder %s24, %s27
      %p33 = scmp.eq.s32.totalorder %s14, 0
      %p34 = por %p32, %p33
      %p35 = scmp.ne.s32.totalorder %s24, %s27
      %p36 = scmp.eq.s32.totalorder %s19, 1
      %p37 = por %p35, %p36
      %p38 = scmp.ne.s32.totalorder %s27, %s28
      %p39 = scmp.eq.s32.totalorder %s19, 0
      %p40 = por %p38, %p39
      %p41 = scmp.ne.s32.totalorder %s27, %s28
      %p42 = scmp.eq.s32.totalorder %s20, 1
      %p43 = por %p41, %p42
      %p45 = scmp.ne.s32.totalorder %s28, %s44
      %p46 = scmp.eq.s32.totalorder %s20, 0
      %p47 = por %p45, %p46
      %s48 = ssub.s32 %s14, %s21
      %p49 = scmp.eq.s32.totalorder %s48, 0
      %s51 = sadd.s32 %s50, 1
      %s52 = scalar_select %p49, %s50, %s51
      %p55 = pneg %p49
      %p56 = scmp.eq.s32.totalorder %s14, 1
      %p57 = por %p55, %p56
      %p58 = scmp.ne.s32.totalorder %s50, %s53
      %p59 = scmp.eq.s32.totalorder %s14, 0
      %p60 = por %p58, %p59
      %p61 = scmp.ne.s32.totalorder %s50, %s53
      %p62 = scmp.eq.s32.totalorder %s19, 1
      %p63 = por %p61, %p62
      %p64 = scmp.ne.s32.totalorder %s53, %s54
      %p65 = scmp.eq.s32.totalorder %s19, 0
      %p66 = por %p64, %p65
      %p67 = scmp.ne.s32.totalorder %s53, %s54
      %p68 = scmp.eq.s32.totalorder %s20, 1
      %p69 = por %p67, %p68
      %p71 = scmp.ne.s32.totalorder %s54, %s70
      %p72 = scmp.eq.s32.totalorder %s20, 0
      %p73 = por %p71, %p72
      %s75 = sadd.s32 %s74, 1
      %p78 = scmp.eq.s32.totalorder %s14, 1
      %p79 = scmp.ne.s32.totalorder %s74, %s76
      %p80 = scmp.eq.s32.totalorder %s14, 0
      %p81 = por %p79, %p80
      %p82 = scmp.ne.s32.totalorder %s74, %s76
      %p83 = scmp.eq.s32.totalorder %s19, 1
      %p84 = por %p82, %p83
      %p85 = scmp.ne.s32.totalorder %s76, %s77
      %p86 = scmp.eq.s32.totalorder %s19, 0
      %p87 = por %p85, %p86
      %p88 = scmp.ne.s32.totalorder %s76, %s77
      %p89 = scmp.eq.s32.totalorder %s20, 1
      %p90 = por %p88, %p89
      %p92 = scmp.ne.s32.totalorder %s77, %s91
      %p93 = scmp.eq.s32.totalorder %s20, 0
      %p94 = por %p92, %p93
      %s96 = sadd.s32 %s95, 1
      %p99 = scmp.eq.s32.totalorder %s14, 1
      %p100 = scmp.ne.s32.totalorder %s95, %s97
      %p101 = scmp.eq.s32.totalorder %s14, 0
      %p102 = por %p100, %p101
      %p103 = scmp.ne.s32.totalorder %s95, %s97
      %p104 = scmp.eq.s32.totalorder %s19, 1
      %p105 = por %p103, %p104
      %p106 = scmp.ne.s32.totalorder %s97, %s98
      %p107 = scmp.eq.s32.totalorder %s19, 0
      %p108 = por %p106, %p107
      %p109 = scmp.ne.s32.totalorder %s97, %s98
      %p110 = scmp.eq.s32.totalorder %s20, 1
      %p111 = por %p109, %p110
      %p113 = scmp.ne.s32.totalorder %s98, %s112
      %p114 = scmp.eq.s32.totalorder %s20, 0
      %p115 = por %p113, %p114
      %s117 = sadd.s32 %s116, 1
      %p120 = scmp.eq.s32.totalorder %s14, 1
      %p121 = scmp.ne.s32.totalorder %s116, %s118
      %p122 = scmp.eq.s32.totalorder %s14, 0
      %p123 = por %p121, %p122
      %p124 = scmp.ne.s32.totalorder %s116, %s118
      %p125 = scmp.eq.s32.totalorder %s19, 1
      %p126 = por %p124, %p125
      %p127 = scmp.ne.s32.totalorder %s118, %s119
      %p128 = scmp.eq.s32.totalorder %s19, 0
      %p129 = por %p127, %p128
      %p130 = scmp.ne.s32.totalorder %s118, %s119
      %p131 = scmp.eq.s32.totalorder %s20, 1
      %p132 = por %p130, %p131
      %p134 = scmp.ne.s32.totalorder %s119, %s133
      %p135 = scmp.eq.s32.totalorder %s20, 0
      %p136 = por %p134, %p135
      %s138 = sadd.s32 %s137, 1
      %p141 = scmp.eq.s32.totalorder %s14, 1
      %p142 = scmp.ne.s32.totalorder %s137, %s139
      %p143 = scmp.eq.s32.totalorder %s14, 0
      %p144 = por %p142, %p143
      %p145 = scmp.ne.s32.totalorder %s137, %s139
      %p146 = scmp.eq.s32.totalorder %s19, 1
      %p147 = por %p145, %p146
      %p148 = scmp.ne.s32.totalorder %s139, %s140
      %p149 = scmp.eq.s32.totalorder %s19, 0
      %p150 = por %p148, %p149
      %p151 = scmp.ne.s32.totalorder %s139, %s140
      %p152 = scmp.eq.s32.totalorder %s20, 1
      %p153 = por %p151, %p152
      %p155 = scmp.ne.s32.totalorder %s140, %s154
      %p156 = scmp.eq.s32.totalorder %s20, 0
      %p157 = por %p155, %p156
      %p158 = scmp.le.s32.totalorder 1, %s14
      %p159 = scmp.lt.s32.totalorder %s14, 3
      %p160 = pnand %p158, %p159
      %p161 = pneg %p160
      // Predicated region
      $region9: #{tpu_custom_call.1} parent=5 // pred_check
        _
      $region10: #{tpu_custom_call.1} parent=5 // pred_check_branch
        %163 = sbr.rel (%p160) target = $region12
      $region11: #{tpu_custom_call.1} parent=5 // pred_region
        %s164 = ssub.s32 %s14, 1
        // Predicated region
        $region13: #{tpu_custom_call.1} parent=11 // pred_check
          %p165 = pneg %p87
        $region14: #{tpu_custom_call.1} parent=11 // pred_check_branch
          %167 = sbr.rel (%p165) target = $region16
        $region15: #{tpu_custom_call.1} parent=11 // pred_region
          _
        $region16: #{tpu_custom_call.1} parent=11 // pred_fallthru
          _
        // Predicated region
        $region17: #{tpu_custom_call.1} parent=11 // pred_check
          %p168 = pneg %p108
        $region18: #{tpu_custom_call.1} parent=11 // pred_check_branch
          %170 = sbr.rel (%p168) target = $region20
        $region19: #{tpu_custom_call.1} parent=11 // pred_region
          _
        $region20: #{tpu_custom_call.1} parent=11 // pred_fallthru
          _
      $region12: #{tpu_custom_call.1} parent=5 // pred_fallthru
        _
      %p171 = scmp.lt.s32.totalorder %s14, 2
      // Predicated region
      $region21: #{tpu_custom_call.1} parent=5 // pred_check
        %p172 = pneg %p171
      $region22: #{tpu_custom_call.1} parent=5 // pred_check_branch
        %174 = sbr.rel (%p172) target = $region24
      $region23: #{tpu_custom_call.1} parent=5 // pred_region
        // Predicated region
        $region25: #{tpu_custom_call.1} parent=23 // pred_check
          %p175 = pneg %p34
        $region26: #{tpu_custom_call.1} parent=23 // pred_check_branch
          %177 = sbr.rel (%p175) target = $region28
        $region27: #{tpu_custom_call.1} parent=23 // pred_region
          %p178 = scmp.lt.s32.totalorder %s14, 1
          %s179 = scalar_select %p178, %s14, 1
          %s180 = scalar_lea.vmem %s0, %s179
        $region28: #{tpu_custom_call.1} parent=23 // pred_fallthru
          _
        // Predicated region
        $region29: #{tpu_custom_call.1} parent=23 // pred_check
          %p181 = pneg %p60
        $region30: #{tpu_custom_call.1} parent=23 // pred_check_branch
          %183 = sbr.rel (%p181) target = $region32
        $region31: #{tpu_custom_call.1} parent=23 // pred_region
          %s184 = smul.u32 16, %s14
          %p185 = scmp.lt.s32.totalorder %s184, 31
          %s186 = scalar_select %p185, %s184, 31
          %s187 = smul.addr %s186, 4
          %s188 = scalar_lea.vmem %s1, %s187
          %s189 = smul.u32 16, %s14
        $region32: #{tpu_custom_call.1} parent=23 // pred_fallthru
          _
      $region24: #{tpu_custom_call.1} parent=5 // pred_fallthru
        _
      %p190 = scmp.le.s32.totalorder 1, %s14
      %p191 = scmp.lt.s32.totalorder %s14, 3
      %p192 = pnand %p190, %p191
      %p193 = pneg %p192
      // Predicated region
      $region33: #{tpu_custom_call.1} parent=5 // pred_check
        _
      $region34: #{tpu_custom_call.1} parent=5 // pred_check_branch
        %195 = sbr.rel (%p192) target = $region36
      $region35: #{tpu_custom_call.1} parent=5 // pred_region
        %s196 = ssub.s32 %s14, 1
        %p197 = scmp.lt.s32.totalorder %s19, 1
        %s198 = scalar_select %p197, %s19, 1
        %s199 = scalar_lea.vmem %s0, %s198
        %p200 = pneg %p40
        %p201 = pneg %p37
        %s202 = smul.u32 16, %s19
        %p203 = scmp.lt.s32.totalorder %s202, 31
        %s204 = scalar_select %p203, %s202, 31
        %s205 = smul.addr %s204, 4
        %s206 = scalar_lea.vmem %s1, %s205
        %p207 = pneg %p66
        %p208 = pneg %p63
        %p209 = pneg %p87
        %p210 = pneg %p84
        %p211 = pneg %p108
        %p212 = pneg %p105
        %p213 = pneg %p129
        %p214 = pneg %p126
        %p215 = pneg %p150
        %p216 = pneg %p147
        %p217 = scmp.lt.s32.totalorder %s19, 1
        %s218 = scalar_select %p217, %s19, 1
        %s219 = scalar_lea.vmem %s0, %s218
        %s220 = smul.u32 16, %s19
        %p221 = scmp.lt.s32.totalorder %s220, 31
        %s222 = scalar_select %p221, %s220, 31
        %s223 = smul.addr %s222, 4
        %s224 = scalar_lea.vmem %s1, %s223
        %s225 = smul.u32 16, %s19
        %p226 = scmp.eq.s32.totalorder %s19, 0
        // Predicated region
        $region37: #{tpu_custom_call.1} parent=35 // pred_check
          %p227 = pneg %p226
        $region38: #{tpu_custom_call.1} parent=35 // pred_check_branch
          %229 = sbr.rel (%p227) target = $region40
        $region39: #{tpu_custom_call.1} parent=35 // pred_region
          %vm230 = vcmask 517120
          %231 = vst.msk [vmem:[#allocation2] sm:$0x3] %vm230, 0.0
        $region40: #{tpu_custom_call.1} parent=35 // pred_fallthru
          _
        %v232 = vld [vmem:[#allocation2] sm:$0x3]
        %v233 = vld [vmem:[%s219] sm:$0x1]
        %v234 = vld [vmem:[%s224] sm:$0xf]
        %v235 = vld [vmem:[%s224 + $0x4] sm:$0xf]
        %v236 = vld [vmem:[%s224 + $0x8] sm:$0xf]
        %v237 = vld [vmem:[%s224 + $0xc] sm:$0xf]
        %v238 = vld [vmem:[%s224 + $0x10] sm:$0xf]
        %v239 = vld [vmem:[%s224 + $0x14] sm:$0xf]
        %v240 = vld [vmem:[%s224 + $0x18] sm:$0xf]
        %v241 = vld [vmem:[%s224 + $0x1c] sm:$0xf]
        %v242 = vld [vmem:[%s224 + $0x20] sm:$0xf]
        %v243 = vld [vmem:[%s224 + $0x24] sm:$0xf]
        %v244 = vld [vmem:[%s224 + $0x28] sm:$0xf]
        %v245 = vld [vmem:[%s224 + $0x2c] sm:$0xf]
        %v246 = vld [vmem:[%s224 + $0x30] sm:$0xf]
        %v247 = vld [vmem:[%s224 + $0x34] sm:$0xf]
        %v248 = vld [vmem:[%s224 + $0x38] sm:$0xf]
        %v249 = vld [vmem:[%s224 + $0x3c] sm:$0xf]
        %v266 = vunpack.c.l.b16 %v234
        %v267 = vunpack.c.l.b16 %v235
        %v268 = vunpack.c.l.b16 %v236
        %v269 = vunpack.c.l.b16 %v237
        %v270 = vunpack.c.l.b16 %v238
        %v271 = vunpack.c.l.b16 %v239
        %v272 = vunpack.c.l.b16 %v240
        %v273 = vunpack.c.l.b16 %v241
        %v274 = vunpack.c.l.b16 %v242
        %v275 = vunpack.c.l.b16 %v243
        %v276 = vunpack.c.l.b16 %v244
        %v277 = vunpack.c.l.b16 %v245
        %v278 = vunpack.c.l.b16 %v246
        %v279 = vunpack.c.l.b16 %v247
        %v280 = vunpack.c.l.b16 %v248
        %v281 = vunpack.c.l.b16 %v249
        %v282 = vpack.c.b16 %v267, %v266
        %v283 = vpack.c.b16 %v269, %v268
        %v284 = vpack.c.b16 %v271, %v270
        %v285 = vpack.c.b16 %v273, %v272
        %v286 = vpack.c.b16 %v275, %v274
        %v287 = vpack.c.b16 %v277, %v276
        %v288 = vpack.c.b16 %v279, %v278
        %v289 = vpack.c.b16 %v281, %v280
        %298 = vmatpush.bf16.msra.mxu0 %v289
        %299 = vmatpush.bf16.msra.mxu0 %v288
        %300 = vmatpush.bf16.msra.mxu0 %v287
        %301 = vmatpush.bf16.msra.mxu0 %v286
        %302 = vmatpush.bf16.msra.mxu0 %v285
        %303 = vmatpush.bf16.msra.mxu0 %v284
        %304 = vmatpush.bf16.msra.mxu0 %v283
        %305 = vmatpush.bf16.msra.mxu0 %v282
        %306 = vmatmul.bf16.gmra.mxu0 %v233
        %v307 = vpop.f32.mrf.mxu0
        %v308 = vadd.f32 0.0, %v307
        %v309 = vpop.f32.mrf.mxu0
        %310 = vdwg.mxu0
        %v311 = vadd.f32 %v232, %v308
        %vm312 = vcmask 517120
        %313 = vst.msk [vmem:[#allocation2] sm:$0x3] %vm312, %v311
        %p314 = scmp.eq.s32.totalorder %s19, 1
        // Predicated region
        $region41: #{tpu_custom_call.1} parent=35 // pred_check
          %p315 = pneg %p314
        $region42: #{tpu_custom_call.1} parent=35 // pred_check_branch
          %317 = sbr.rel (%p315) target = $region44
        $region43: #{tpu_custom_call.1} parent=35 // pred_region
          %v318 = vld [vmem:[#allocation2] sm:$0x3]
          %v319 = vmul.f32 %v318, 0.17677669
          %v320 = vld [vmem:[%s2] sm:$0x1]
          %v322 = vperm.slane %v320, 0
          %v324 = vadd.f32 %v319, %v322
          %v325 = vmul.f32 %v324, 0.5
          %v326 = vmul.f32 %v325, 1.442695
          %v327 = vpow.pop %v326
          %v328 = vld [vmem:[%s3] sm:$0x3]
          %330 = vrot.lane.b32.xlu0 %v327, 96
          %v331 = vpop.permute.xlu0 %330
          %v333 = vmul.f32 %v328, %v331
          %v334 = vadd.f32 %v324, %v333
          %v335 = vpack.c.bf16 %v334, %v334
          %vm336 = vcmask 253952
          %337 = vst.msk [vmem:[#allocation3] sm:$0x1] %vm336, %v335
          %v338 = vadd.f32 %v324, 1.0
          %v339 = vmul.f32 %v324, %v324
          %341 = vrot.lane.b32.xlu0 %v339, 32
          %v342 = vpop.permute.xlu0 %341
          %v344 = vsub.f32 %v338, %v342
          %v345 = vmul.f32 %v327, %v327
          %v346 = vsub.f32 %v344, %v345
          %348 = vrot.lane.b32.xlu0 %v346, 96
          %v349 = vpop.permute.xlu0 %348
          %vm351 = vcmask 254976
          %v352 = vsel %vm351, %v349, 0.0
          %353 = vadd.xlane.f32.xlu0 %v352
          %v354 = vpop.xlane.xlu0 %353
          %v355 = vrot.slane %v354, 4
          %v356 = vadd.f32 %v354, %v355
          %v357 = vrot.slane %v356, 2
          %v358 = vadd.f32 %v356, %v357
          %v359 = vrot.slane %v358, 1
          %v360 = vadd.f32 %v358, %v359
          %s361 = vtos %v360
          %s362 = smul.f32 %s361, -0.5
          %v363 = vrcp.pop 2.0
          %v364 = vmul.f32 2.0, %v363
          %v365 = vsub.f32 1.0, %v364
          %v366 = vmul.f32 %v363, %v365
          %v367 = vadd.f32 %v363, %v366
          %vm368 = vweird.f32 %v363
          %v369 = vsel %vm368, %v363, %v367
          %s370 = vtos %v369
          %s371 = smul.f32 %s362, %s370
          %s372 = scalar_lea.smem [#allocation6], 0
          %373 = sst [smem:[%s372]] %s371
        $region44: #{tpu_custom_call.1} parent=35 // pred_fallthru
          _
        // Predicated region
        $region45: #{tpu_custom_call.1} parent=35 // pred_check
          %p374 = pneg %p126
        $region46: #{tpu_custom_call.1} parent=35 // pred_check_branch
          %376 = sbr.rel (%p374) target = $region48
        $region47: #{tpu_custom_call.1} parent=35 // pred_region
          %378 = vsyncadd [#allocation4], 0
          %s380 = sshll.u32 [#allocation3], 4
          %s381 = int_to_ptr.vmem [resolvable:$true] %s380
          %s382 = sshll.u32 %s4, 4
          %s383 = int_to_ptr.hbm [resolvable:$true] %s382
          %385 = dma.vmem_to_hbm [thread:$0]  %s381, 16, %s383, [#allocation4]
        $region48: #{tpu_custom_call.1} parent=35 // pred_fallthru
          _
        // Predicated region
        $region49: #{tpu_custom_call.1} parent=35 // pred_check
          %p386 = pneg %p147
        $region50: #{tpu_custom_call.1} parent=35 // pred_check_branch
          %388 = sbr.rel (%p386) target = $region52
        $region51: #{tpu_custom_call.1} parent=35 // pred_region
          %390 = vsyncadd [#allocation5], 0
          %s392 = sshll.u32 %s5, 4
          %s393 = int_to_ptr.hbm [resolvable:$true] %s392
          %395 = dma.smem_to_hbm [#allocation6], 16, %s393, [#allocation5]
        $region52: #{tpu_custom_call.1} parent=35 // pred_fallthru
          _
        // Predicated region
        $region53: #{tpu_custom_call.1} parent=35 // pred_check
          %p396 = pneg %p126
        $region54: #{tpu_custom_call.1} parent=35 // pred_check_branch
          %398 = sbr.rel (%p396) target = $region56
        $region55: #{tpu_custom_call.1} parent=35 // pred_region
          %400 = dma.done [#allocation4], 16
        $region56: #{tpu_custom_call.1} parent=35 // pred_fallthru
          _
        // Predicated region
        $region57: #{tpu_custom_call.1} parent=35 // pred_check
          %p401 = pneg %p147
        $region58: #{tpu_custom_call.1} parent=35 // pred_check_branch
          %403 = sbr.rel (%p401) target = $region60
        $region59: #{tpu_custom_call.1} parent=35 // pred_region
          %405 = dma.done [#allocation5], 16
        $region60: #{tpu_custom_call.1} parent=35 // pred_fallthru
          _
        %406 = sfence
      $region36: #{tpu_custom_call.1} parent=5 // pred_fallthru
        _
      %p407 = scmp.le.s32.totalorder 2, %s14
      // Predicated region
      $region61: #{tpu_custom_call.1} parent=5 // pred_check
        %p408 = pneg %p407
      $region62: #{tpu_custom_call.1} parent=5 // pred_check_branch
        %410 = sbr.rel (%p408) target = $region64
      $region63: #{tpu_custom_call.1} parent=5 // pred_region
        %s411 = ssub.s32 %s14, 2
      $region64: #{tpu_custom_call.1} parent=5 // pred_fallthru
        _
    $region6: #{tpu_custom_call.1} parent=1 // loop_footer
      %s18 = sadd.s32 1, %s14
    $region7: #{tpu_custom_call.1} parent=1 // loop_footer_branch
      %13 = sbr.rel target = $region3
    $region8: #{tpu_custom_call.1} parent=1 // loop_exit
      _
    %412 = vsyncpa [#allocation4], 1
    %s413 = scalar_lea.sflag [#allocation4], 1
    %414 = vsyncpa %s413, 1
    %415 = vsyncpa [#allocation5], 1
    %s416 = scalar_lea.sflag [#allocation5], 1
    %417 = vsyncpa %s416, 1

</llo_original>
